<compile_context>
chip_gen: v5e
topology: v5e:2x2
jax: 0.10.0
libtpu: 0.0.40
codegen_flags: <defaults>
</compile_context>

<pallas_src>
import functools

import jax
import jax.numpy as jnp
import numpy as np
from jax import lax
from jax.experimental import pallas as pl
from jax.experimental.pallas import tpu as pltpu


def _conv3x3_relu_kernel(x_ref, w_ref, b_ref, o_ref, xp_ref, *, H, W):
    """Fused 3x3 stride-1 pad-1 conv + bias + ReLU for one batch tile.

    x_ref : (bt*Cin,  H*W)            flattened NCHW activations (lanes = H*W)
    w_ref : (bt*Cout, 9*bt*Cin)       block-diagonal im2col weights
    b_ref : (bt*Cout, 1)              per-row bias
    o_ref : (bt*Cout, H*W)            flattened NCHW output (lane dense)
    xp_ref: (bt*Cin,  H*W + 2*(W+1))  VMEM scratch: flat zero halo
    """
    HW = H * W
    pad = W + 1

    x = x_ref[...]  # (bt*Cin, HW) f32

    # Flat zero halo around the image, built in VMEM (no wrapper pad /
    # transpose).  Vertical out-of-range taps land in the halo; horizontal
    # wrap-around is killed by the per-tap column masks below.
    xp_ref[...] = jnp.zeros_like(xp_ref)
    xp_ref[:, pad:pad + HW] = x

    # Column index of every flattened output pixel (lane axis).
    col = lax.broadcasted_iota(jnp.int32, (1, HW), 1) % W
    left_edge = col == 0        # invalid positions for dw == -1
    right_edge = col == W - 1   # invalid positions for dw == +1

    # im2col: 9 shifted taps, each a cheap static lane-offset load from the
    # halo, stacked along sublanes.  Tap-major row order matches w_ref's K.
    taps = []
    for kh in range(3):
        for kw in range(3):
            dh, dw = kh - 1, kw - 1
            start = pad + dh * W + dw            # in [0, 2*(W+1)]
            t = xp_ref[:, start:start + HW]      # (bt*Cin, HW)
            if dw == -1:
                t = jnp.where(left_edge, 0.0, t)
            elif dw == 1:
                t = jnp.where(right_edge, 0.0, t)
            taps.append(t)
    cols_mat = jnp.concatenate(taps, axis=0)     # (9*bt*Cin, HW)

    # One MXU matmul covers all taps and the whole batch tile.
    acc = jnp.dot(w_ref[...], cols_mat, preferred_element_type=jnp.float32)
    acc = jnp.maximum(acc + b_ref[...], 0.0)     # bias + ReLU
    o_ref[...] = acc.astype(o_ref.dtype)         # (bt*Cout, HW) unmasked stores


def conv3x3_relu_pallas(x_nchw, w_oihw, bias, *, batch_tile=None):
    """3x3 stride-1 pad-1 conv + bias + ReLU.

    x_nchw: (B, Cin, H, W) float32 (PyTorch NCHW, consumed directly).
    w_oihw: (Cout, Cin, 3, 3), bias: (Cout,).  Returns (B, Cout, H, W).
    """
    B, Cin, H, W = x_nchw.shape
    Cout = w_oihw.shape[0]
    HW = H * W

    bt = B if batch_tile is None else batch_tile
    if B % bt != 0:
        raise ValueError("batch_tile must divide the batch size")
    if bt < B:
        # sub-batch tiles must keep the sublane axis 8-aligned
        assert (bt * Cin) % 8 == 0 and (bt * Cout) % 8 == 0

    # Flatten spatial dims onto the lane axis (free reshape of contiguous NCHW).
    x2 = x_nchw.reshape(B * Cin, HW)

    # Block-diagonal im2col weight: rows = (b, co), cols = (tap, b, ci).
    # One (bt*Cout, 9*bt*Cin) @ (9*bt*Cin, HW) matmul then covers the whole
    # batch tile — no per-batch slicing inside the kernel.
    w_t = jnp.transpose(w_oihw, (2, 3, 0, 1)).reshape(9, Cout, Cin)  # (tap, co, ci)
    eye = jnp.eye(bt, dtype=w_oihw.dtype)
    w_big = jnp.einsum("toc,bB->botBc", w_t, eye).reshape(bt * Cout, 9 * bt * Cin)
    b_big = jnp.tile(bias, (bt,)).reshape(bt * Cout, 1)

    kernel = functools.partial(_conv3x3_relu_kernel, H=H, W=W)

    out2 = pl.pallas_call(
        kernel,
        out_shape=jax.ShapeDtypeStruct((B * Cout, HW), x_nchw.dtype),
        grid_spec=pltpu.PrefetchScalarGridSpec(
            num_scalar_prefetch=0,
            grid=(B // bt,),
            in_specs=[
                pl.BlockSpec((bt * Cin, HW), lambda i: (i, 0)),
                pl.BlockSpec((bt * Cout, 9 * bt * Cin), lambda i: (0, 0)),
                pl.BlockSpec((bt * Cout, 1), lambda i: (0, 0)),
            ],
            out_specs=pl.BlockSpec((bt * Cout, HW), lambda i: (i, 0)),
            scratch_shapes=[
                pltpu.VMEM((bt * Cin, HW + 2 * (W + 1)), jnp.float32),
            ],
        ),
        compiler_params=pltpu.CompilerParams(
            dimension_semantics=("parallel",),
        ),
    )(x2, w_big, b_big)

    # Free metadata reshape back to NCHW.
    return out2.reshape(B, Cout, H, W)


class ConvNetMod:
    """Concrete NetMod: Conv2d(Cin, Cout, k=3, s=1, p=1) + ReLU, no hidden state.

    Mirrors NetMod.forward(): runs _forward, then casts the feature map to the
    requested dimensionality via pure reshapes (the torch .view equivalents).
    """

    def __init__(self, name, input_shape, out_channels, key):
        self.name = name
        self.input_shape = input_shape              # (Cin, H, W)
        cin, h, w = input_shape
        self.out_channels = out_channels
        self._h, self._w = h, w
        k_w, k_b = jax.random.split(key)
        # PyTorch-style OIHW weights, Kaiming-ish init (synthetic, no checkpoint).
        fan_in = cin * 9
        self.weight = (jax.random.normal(k_w, (out_channels, cin, 3, 3), jnp.float32)
                       * jnp.sqrt(2.0 / fan_in))
        self.bias = jax.random.normal(k_b, (out_channels,), jnp.float32) * 0.1

    @classmethod
    def dim(cls):
        return 3

    # --- NetMod shape plumbing ---
    def _output_shape(self):
        return (self.out_channels, self._h, self._w)

    def _shape_1d(self):
        c, h, w = self._output_shape()
        return (c * h * w,)

    def _shape_2d(self):
        c, h, w = self._output_shape()
        return (c, h * w)

    def _shape_3d(self):
        return self._output_shape()

    def _shape_4d(self):
        c, h, w = self._output_shape()
        return (c, h, w, 1)

    def new_hidden_states(self, batch_sz=1):
        return None

    def output_shape(self, dim=None):
        if dim is None:
            dim = len(self._output_shape())
        if dim == 1:
            return self._shape_1d()
        if dim == 2:
            return self._shape_2d()
        if dim == 3:
            return self._shape_3d()
        if dim == 4:
            return self._shape_4d()
        raise Exception(f"Invalid dim: {dim}")

    # --- forward pass (hot path in Pallas) ---
    def _forward(self, x, hiddens):
        return conv3x3_relu_pallas(x, self.weight, self.bias), None

    def forward(self, x, hiddens=None, dim=None):
        if dim is None:
            dim = len(self._output_shape())
        out, nxt_hiddens = self._forward(x, hiddens)
        b = out.shape[0]
        if dim == 1:
            out = out.reshape(b, *self._shape_1d())
        elif dim == 2:
            out = out.reshape(b, *self._shape_2d())
        elif dim == 3:
            out = out.reshape(b, *self._shape_3d())
        elif dim == 4:
            out = out.reshape(b, *self._shape_4d())
        else:
            raise Exception(f"Invalid dim: {dim}")
        return out, nxt_hiddens


if __name__ == "__main__":
    key = jax.random.PRNGKey(0)
    k_x, k_w = jax.random.split(key)

    B, Cin, H, W = 2, 4, 16, 16
    Cout = 8
    x = jax.random.normal(k_x, (B, Cin, H, W), jnp.float32)

    mod = ConvNetMod("conv_netmod", (Cin, H, W), Cout, k_w)

    # Default dim = len(_output_shape()) = 3 -> output (B, Cout, H, W)
    out3, hid = mod.forward(x)
    out3 = jax.block_until_ready(out3)
    assert out3.shape == (B, Cout, H, W) and hid is None

    # Exercise the other dim casts (pure reshapes of the same feature map).
    out1, _ = mod.forward(x, dim=1)
    out2, _ = mod.forward(x, dim=2)
    out4, _ = mod.forward(x, dim=4)
    jax.block_until_ready((out1, out2, out4))
    assert out1.shape == (B, Cout * H * W)
    assert out2.shape == (B, Cout, H * W)
    assert out4.shape == (B, Cout, H, W, 1)

    # Reference check against XLA conv (NCHW, OIHW) + bias + ReLU.
    ref = jax.lax.conv_general_dilated(
        x, mod.weight, window_strides=(1, 1), padding=((1, 1), (1, 1)),
        dimension_numbers=("NCHW", "OIHW", "NCHW"))
    ref = jnp.maximum(ref + mod.bias[None, :, None, None], 0.0)
    np.testing.assert_allclose(np.asarray(out3), np.asarray(ref),
                               atol=5e-5, rtol=5e-5)

    print("KERNEL_OK")
</pallas_src>

<mosaic_0001>
module attributes {stable_mosaic.version = 11 : i64} {
  func.func @_conv3x3_relu_kernel(%arg0: i32, %arg1: memref<8x256xf32, #tpu.memory_space<vmem>>, %arg2: memref<16x72xf32, #tpu.memory_space<vmem>>, %arg3: memref<16x1xf32, #tpu.memory_space<vmem>>, %arg4: memref<16x256xf32, #tpu.memory_space<vmem>>, %arg5: memref<8x290xf32, #tpu.memory_space<vmem>>) attributes {dimension_semantics = [#tpu.dimension_semantics<parallel>], iteration_bounds = array<i64: 1>, scalar_prefetch = 0 : i64, scratch_operands = 1 : i64, tpu.core_type = #tpu.core_type<tc>, window_params = [{transform_indices = @transform_0, window_bounds = array<i64: 8, 256>}, {pipeline_mode = #tpu.pipeline_mode<synchronous>, transform_indices = @transform_1, window_bounds = array<i64: 16, 72>}, {pipeline_mode = #tpu.pipeline_mode<synchronous>, transform_indices = @transform_2, window_bounds = array<i64: 16, 1>}, {transform_indices = @transform_3, window_bounds = array<i64: 16, 256>}]} {
    %c0 = arith.constant 0 : index
    %c0_0 = arith.constant 0 : index
    %0 = vector.load %arg1[%c0, %c0_0] : memref<8x256xf32, #tpu.memory_space<vmem>>, vector<8x256xf32>
    %cst = arith.constant 0.000000e+00 : f32
    %1 = vector.broadcast %cst : f32 to vector<8x290xf32>
    %c0_1 = arith.constant 0 : index
    %c0_2 = arith.constant 0 : index
    %2 = vector.load %arg5[%c0_1, %c0_2] : memref<8x290xf32, #tpu.memory_space<vmem>>, vector<8x290xf32>
    tpu.vector_store %arg5[%c0_1, %c0_2], %1 {strides = array<i32>} : memref<8x290xf32, #tpu.memory_space<vmem>>, vector<8x290xf32>,
    %c0_3 = arith.constant 0 : index
    %c17 = arith.constant 17 : index
    %3 = vector.load %arg5[%c0_3, %c17] : memref<8x290xf32, #tpu.memory_space<vmem>>, vector<8x256xf32>
    tpu.vector_store %arg5[%c0_3, %c17], %0 {strides = array<i32>} : memref<8x290xf32, #tpu.memory_space<vmem>>, vector<8x256xf32>,
    %4 = tpu.iota {dimensions = array<i32: 1>} : vector<1x256xi32>
    %c16_i32 = arith.constant 16 : i32
    %c0_i32 = arith.constant 0 : i32
    %5 = arith.cmpi eq, %c16_i32, %c0_i32 : i32
    %c1_i32 = arith.constant 1 : i32
    %6 = arith.select %5, %c1_i32, %c16_i32 : i32
    %7 = vector.broadcast %6 : i32 to vector<1x256xi32>
    %8 = arith.remsi %4, %7 : vector<1x256xi32>
    %c0_i32_4 = arith.constant 0 : i32
    %9 = vector.broadcast %c0_i32_4 : i32 to vector<1x256xi32>
    %10 = arith.cmpi ne, %8, %9 : vector<1x256xi32>
    %c0_i32_5 = arith.constant 0 : i32
    %11 = vector.broadcast %c0_i32_5 : i32 to vector<1x256xi32>
    %12 = arith.cmpi slt, %8, %11 : vector<1x256xi32>
    %c0_i32_6 = arith.constant 0 : i32
    %13 = arith.cmpi slt, %6, %c0_i32_6 : i32
    %14 = vector.broadcast %13 : i1 to vector<1x256xi1>
    %15 = vector.broadcast %14 : vector<1x256xi1> to vector<1x256xi1>
    %16 = arith.xori %12, %15 : vector<1x256xi1>
    %17 = arith.andi %16, %10 : vector<1x256xi1>
    %18 = vector.broadcast %6 : i32 to vector<1x256xi32>
    %19 = arith.addi %8, %18 : vector<1x256xi32>
    %20 = arith.select %17, %19, %8 : vector<1x256xi1>, vector<1x256xi32>
    %c0_i32_7 = arith.constant 0 : i32
    %21 = vector.broadcast %c0_i32_7 : i32 to vector<1x256xi32>
    %22 = arith.cmpi eq, %20, %21 : vector<1x256xi32>
    %c15_i32 = arith.constant 15 : i32
    %23 = vector.broadcast %c15_i32 : i32 to vector<1x256xi32>
    %24 = arith.cmpi eq, %20, %23 : vector<1x256xi32>
    %c0_8 = arith.constant 0 : index
    %c0_9 = arith.constant 0 : index
    %25 = vector.load %arg5[%c0_8, %c0_9] : memref<8x290xf32, #tpu.memory_space<vmem>>, vector<8x256xf32>
    %cst_10 = arith.constant 0.000000e+00 : f32
    %26 = vector.shape_cast %22 : vector<1x256xi1> to vector<1x256xi1>
    %27 = vector.broadcast %26 : vector<1x256xi1> to vector<8x256xi1>
    %28 = vector.broadcast %cst_10 : f32 to vector<8x256xf32>
    %29 = arith.select %27, %28, %25 : vector<8x256xi1>, vector<8x256xf32>
    %c0_11 = arith.constant 0 : index
    %c1 = arith.constant 1 : index
    %30 = vector.load %arg5[%c0_11, %c1] : memref<8x290xf32, #tpu.memory_space<vmem>>, vector<8x256xf32>
    %c0_12 = arith.constant 0 : index
    %c2 = arith.constant 2 : index
    %31 = vector.load %arg5[%c0_12, %c2] : memref<8x290xf32, #tpu.memory_space<vmem>>, vector<8x256xf32>
    %cst_13 = arith.constant 0.000000e+00 : f32
    %32 = vector.shape_cast %24 : vector<1x256xi1> to vector<1x256xi1>
    %33 = vector.broadcast %32 : vector<1x256xi1> to vector<8x256xi1>
    %34 = vector.broadcast %cst_13 : f32 to vector<8x256xf32>
    %35 = arith.select %33, %34, %31 : vector<8x256xi1>, vector<8x256xf32>
    %c0_14 = arith.constant 0 : index
    %c16 = arith.constant 16 : index
    %36 = vector.load %arg5[%c0_14, %c16] : memref<8x290xf32, #tpu.memory_space<vmem>>, vector<8x256xf32>
    %cst_15 = arith.constant 0.000000e+00 : f32
    %37 = vector.shape_cast %22 : vector<1x256xi1> to vector<1x256xi1>
    %38 = vector.broadcast %37 : vector<1x256xi1> to vector<8x256xi1>
    %39 = vector.broadcast %cst_15 : f32 to vector<8x256xf32>
    %40 = arith.select %38, %39, %36 : vector<8x256xi1>, vector<8x256xf32>
    %c0_16 = arith.constant 0 : index
    %c17_17 = arith.constant 17 : index
    %41 = vector.load %arg5[%c0_16, %c17_17] : memref<8x290xf32, #tpu.memory_space<vmem>>, vector<8x256xf32>
    %c0_18 = arith.constant 0 : index
    %c18 = arith.constant 18 : index
    %42 = vector.load %arg5[%c0_18, %c18] : memref<8x290xf32, #tpu.memory_space<vmem>>, vector<8x256xf32>
    %cst_19 = arith.constant 0.000000e+00 : f32
    %43 = vector.shape_cast %24 : vector<1x256xi1> to vector<1x256xi1>
    %44 = vector.broadcast %43 : vector<1x256xi1> to vector<8x256xi1>
    %45 = vector.broadcast %cst_19 : f32 to vector<8x256xf32>
    %46 = arith.select %44, %45, %42 : vector<8x256xi1>, vector<8x256xf32>
    %c0_20 = arith.constant 0 : index
    %c32 = arith.constant 32 : index
    %47 = vector.load %arg5[%c0_20, %c32] : memref<8x290xf32, #tpu.memory_space<vmem>>, vector<8x256xf32>
    %cst_21 = arith.constant 0.000000e+00 : f32
    %48 = vector.shape_cast %22 : vector<1x256xi1> to vector<1x256xi1>
    %49 = vector.broadcast %48 : vector<1x256xi1> to vector<8x256xi1>
    %50 = vector.broadcast %cst_21 : f32 to vector<8x256xf32>
    %51 = arith.select %49, %50, %47 : vector<8x256xi1>, vector<8x256xf32>
    %c0_22 = arith.constant 0 : index
    %c33 = arith.constant 33 : index
    %52 = vector.load %arg5[%c0_22, %c33] : memref<8x290xf32, #tpu.memory_space<vmem>>, vector<8x256xf32>
    %c0_23 = arith.constant 0 : index
    %c34 = arith.constant 34 : index
    %53 = vector.load %arg5[%c0_23, %c34] : memref<8x290xf32, #tpu.memory_space<vmem>>, vector<8x256xf32>
    %cst_24 = arith.constant 0.000000e+00 : f32
    %54 = vector.shape_cast %24 : vector<1x256xi1> to vector<1x256xi1>
    %55 = vector.broadcast %54 : vector<1x256xi1> to vector<8x256xi1>
    %56 = vector.broadcast %cst_24 : f32 to vector<8x256xf32>
    %57 = arith.select %55, %56, %53 : vector<8x256xi1>, vector<8x256xf32>
    %58 = tpu.concatenate %29, %30, %35, %40, %41, %46, %51, %52, %57 in 0 : vector<8x256xf32>, vector<8x256xf32>, vector<8x256xf32>, vector<8x256xf32>, vector<8x256xf32>, vector<8x256xf32>, vector<8x256xf32>, vector<8x256xf32>, vector<8x256xf32> -> vector<72x256xf32>
    %c0_25 = arith.constant 0 : index
    %c0_26 = arith.constant 0 : index
    %59 = vector.load %arg2[%c0_25, %c0_26] : memref<16x72xf32, #tpu.memory_space<vmem>>, vector<16x72xf32>
    %cst_27 = arith.constant dense<0.000000e+00> : vector<16x256xf32>
    %60 = tpu.matmul %59, %58, %cst_27 {dimension_numbers = #tpu.dot_dimension_numbers<[1], [0], [0], [1], [0, 0, 1, 1], [], []>} : vector<16x72xf32>, vector<72x256xf32>, vector<16x256xf32> -> vector<16x256xf32>
    %c0_28 = arith.constant 0 : index
    %c0_29 = arith.constant 0 : index
    %61 = vector.load %arg3[%c0_28, %c0_29] : memref<16x1xf32, #tpu.memory_space<vmem>>, vector<16x1xf32>
    %62 = vector.broadcast %61 : vector<16x1xf32> to vector<16x256xf32>
    %63 = arith.addf %60, %62 : vector<16x256xf32>
    %cst_30 = arith.constant 0.000000e+00 : f32
    %64 = vector.broadcast %cst_30 : f32 to vector<16x256xf32>
    %65 = arith.maximumf %63, %64 : vector<16x256xf32>
    %c0_31 = arith.constant 0 : index
    %c0_32 = arith.constant 0 : index
    %66 = vector.load %arg4[%c0_31, %c0_32] : memref<16x256xf32, #tpu.memory_space<vmem>>, vector<16x256xf32>
    tpu.vector_store %arg4[%c0_31, %c0_32], %65 {strides = array<i32>} : memref<16x256xf32, #tpu.memory_space<vmem>>, vector<16x256xf32>,
    return
  }
  func.func @transform_0(%arg0: i32) -> (i32, i32) {
    %c0_i32 = arith.constant 0 : i32
    %c0_i32_0 = arith.constant 0 : i32
    return %arg0, %c0_i32 : i32, i32
  }
  func.func @transform_1(%arg0: i32) -> (i32, i32) {
    %c0_i32 = arith.constant 0 : i32
    %c0_i32_0 = arith.constant 0 : i32
    %c0_i32_1 = arith.constant 0 : i32
    return %c0_i32, %c0_i32_0 : i32, i32
  }
  func.func @transform_2(%arg0: i32) -> (i32, i32) {
    %c0_i32 = arith.constant 0 : i32
    %c0_i32_0 = arith.constant 0 : i32
    %c0_i32_1 = arith.constant 0 : i32
    return %c0_i32, %c0_i32_0 : i32, i32
  }
  func.func @transform_3(%arg0: i32) -> (i32, i32) {
    %c0_i32 = arith.constant 0 : i32
    %c0_i32_0 = arith.constant 0 : i32
    return %arg0, %c0_i32 : i32, i32
  }
}

</mosaic_0001>

<llo_original>
// kernel: tpu_custom_call.1
$region0: #{tpu_custom_call.1}
  #allocation0 [shape = 'u32[]', space=smem, size = 0x4, offset = 0x4, fixed_abs, tag = 'smem constant byte address 0x4 - core index']
  #allocation1 [shape = 'u32[72,128]{1,0:T(1,128)}', space=vmem, size = 0x9000, scoped, tag = 'internal scratch']
  #allocation2 [shape = 'f32[8,290]{1,0:T(8,128)}', space=vmem, size = 0x3000, scoped, tag = 'scratch operand']
  %s0 = inlined_call_operand.vmem [shape: f32[8,256], index: 0, kind: input, shape index: {}]
  %s1 = inlined_call_operand.hbm [shape: f32[16,72], index: 1, kind: input, shape index: {}]
  %s2 = inlined_call_operand.vmem [shape: f32[16,1], index: 2, kind: input, shape index: {}]
  %s3 = inlined_call_operand.hbm [shape: f32[16,256], index: 3, kind: output, shape index: {}]
  %s4 = sld [smem:[#allocation0]]
  $region26: #{tpu_custom_call.1} parent=0
    _
  %s6 = ssub.s32 1, %s4
  %s7 = scalar_select 0, %s6, %s4
  $region1: #{tpu_custom_call.1} parent=0
    #allocation3 [shape = 'u8[8192]{0}', space=vmem, size = 0x2000, scoped, tag = 'input window, operand 1, single buffered']
    #allocation4 [shape = 's32[1]{0}', space=sflag, size = 0x4, scoped, tag = 'scoped memory for tpu_custom_call.1']
    #allocation5 [shape = 's32[1]{0}', space=sflag, size = 0x4, scoped, tag = 'scoped memory for tpu_custom_call.1']
    #allocation6 [shape = 'u8[16384]{0}', space=vmem, size = 0x4000, scoped, tag = 'output window, operand 0, single buffered']
    %8 = vsyncpa [#allocation4], 0
    %9 = vsyncpa [#allocation5], 0
    // Predicated region
    $region2: #{tpu_custom_call.1} parent=1 // pred_check
      _
    $region3: #{tpu_custom_call.1} parent=1 // pred_check_branch
      %11 = sbr.rel (0) target = $region5
    $region4: #{tpu_custom_call.1} parent=1 // pred_region
      _
    $region5: #{tpu_custom_call.1} parent=1 // pred_fallthru
      _
    // Predicated region
    $region6: #{tpu_custom_call.1} parent=1 // pred_check
      _
    $region7: #{tpu_custom_call.1} parent=1 // pred_check_branch
      %13 = sbr.rel (0) target = $region9
    $region8: #{tpu_custom_call.1} parent=1 // pred_region
      %15 = vsyncadd [#allocation4], 0
      %s16 = sshll.u32 %s1, 4
      %s17 = int_to_ptr.hbm [resolvable:$true] %s16
      %s18 = sshll.u32 [#allocation3], 4
      %s19 = int_to_ptr.vmem [resolvable:$true] %s18
      %24 = dma.hbm_to_vmem [thread:$0]  %s17, 256, %s19, [#allocation4], 128, 128, 8
    $region9: #{tpu_custom_call.1} parent=1 // pred_fallthru
      _
    // Predicated region
    $region10: #{tpu_custom_call.1} parent=1 // pred_check
      _
    $region11: #{tpu_custom_call.1} parent=1 // pred_check_branch
      %26 = sbr.rel (0) target = $region13
    $region12: #{tpu_custom_call.1} parent=1 // pred_region
      _
    $region13: #{tpu_custom_call.1} parent=1 // pred_fallthru
      _
    // Predicated region
    $region14: #{tpu_custom_call.1} parent=1 // pred_check
      _
    $region15: #{tpu_custom_call.1} parent=1 // pred_check_branch
      %28 = sbr.rel (0) target = $region17
    $region16: #{tpu_custom_call.1} parent=1 // pred_region
      %30 = dma.done [#allocation4], 256
    $region17: #{tpu_custom_call.1} parent=1 // pred_fallthru
      _
    %v31 = vld [vmem:[%s0] sm:$0xff]
    %v32 = vld [vmem:[%s0 + $0x8] sm:$0xff]
    %33 = vst [vmem:[#allocation2] sm:$0xff] 0.0
    %34 = vst [vmem:[#allocation2 + $0x8] sm:$0xff] 0.0
    %vm35 = vcmask 277504
    %36 = vst.msk [vmem:[#allocation2 + $0x10] sm:$0xff] %vm35, 0.0
    %39 = vrot.lane.b32.xlu0 %v31, 17
    %v40 = vpop.permute.xlu0 %39
    %41 = vrot.lane.b32.xlu0 %v32, 17
    %v42 = vpop.permute.xlu0 %41
    %vm43 = vcmask 138240
    %v44 = vsel %vm43, %v40, %v42
    %vm48 = vcmask 1047688
    %49 = vst.msk [vmem:[#allocation2] sm:$0xff] %vm48, %v40
    %50 = vst [vmem:[#allocation2 + $0x8] sm:$0xff] %v44
    %51 = vst.msk [vmem:[#allocation2 + $0x10] sm:$0xff] %vm43, %v42
    %v52 = vlaneseq
    %v53 = vand.u32 %v52, 127
    %v54 = vadd.s32 %v53, 128
    %vm55 = vcmp.lt.s32.totalorder %v53, 0
    %v56 = vsub.s32 0, %v53
    %v57 = vsel %vm55, %v56, %v53
    %v58 = vshrl.u32 %v57, 4
    %v59 = vand.u32 %v57, 15
    %v60 = vsub.s32 0, %v59
    %v61 = vsel %vm55, %v60, %v59
    %vm62 = vcmp.lt.s32.totalorder %v54, 0
    %v63 = vsub.s32 0, %v54
    %v64 = vsel %vm62, %v63, %v54
    %v65 = vshrl.u32 %v64, 4
    %v66 = vand.u32 %v64, 15
    %v67 = vsub.s32 0, %v66
    %v68 = vsel %vm62, %v67, %v66
    %vm69 = vcmp.ne.s32.totalorder %v61, 0
    %vm70 = vcmp.ne.s32.totalorder %v68, 0
    %vm71 = vcmp.lt.s32.totalorder %v61, 0
    %vm72 = vcmp.lt.s32.totalorder %v68, 0
    %vm73 = vmand %vm71, %vm69
    %vm74 = vmand %vm72, %vm70
    %v75 = vadd.s32 %v61, 16
    %v76 = vadd.s32 %v68, 16
    %v77 = vsel %vm73, %v75, %v61
    %v78 = vsel %vm74, %v76, %v68
    %vm79 = vcmp.eq.s32.totalorder %v77, 0
    %vm80 = vcmp.eq.s32.totalorder %v78, 0
    %vm81 = vcmp.eq.s32.totalorder %v77, 15
    %vm82 = vcmp.eq.s32.totalorder %v78, 15
    %v83 = vld [vmem:[#allocation2] sm:$0xff]
    %v84 = vld [vmem:[#allocation2 + $0x8] sm:$0xff]
    %v85 = vsel %vm79, 1, 0
    %v86 = vsel %vm80, 1, 0
    %vm87 = vcmp.eq.s32.totalorder %v85, 1
    %vm88 = vcmp.eq.s32.totalorder %v86, 1
    %v89 = vsel %vm87, 0.0, %v83
    %v90 = vsel %vm88, 0.0, %v84
    %v91 = vld [vmem:[#allocation2 + $0x10] sm:$0xff]
    %v92 = vsel %vm81, 1, 0
    %v93 = vsel %vm82, 1, 0
    %vm94 = vcmp.eq.s32.totalorder %v92, 1
    %vm95 = vcmp.eq.s32.totalorder %v93, 1
    %99 = vrot.lane.b32.xlu0 %v83, 126
    %v100 = vpop.permute.xlu0 %99
    %101 = vrot.lane.b32.xlu0 %v84, 126
    %v102 = vpop.permute.xlu0 %101
    %103 = vrot.lane.b32.xlu0 %v91, 126
    %v104 = vpop.permute.xlu0 %103
    %vm105 = vcmask 1031168
    %v106 = vsel %vm105, %v100, %v102
    %v107 = vsel %vm105, %v102, %v104
    %v110 = vsel %vm94, 0.0, %v106
    %v111 = vsel %vm95, 0.0, %v107
    %112 = vrot.lane.b32.xlu0 %v83, 112
    %v113 = vpop.permute.xlu0 %112
    %114 = vrot.lane.b32.xlu0 %v84, 112
    %v115 = vpop.permute.xlu0 %114
    %116 = vrot.lane.b32.xlu0 %v91, 112
    %v117 = vpop.permute.xlu0 %116
    %vm118 = vcmask 916480
    %v119 = vsel %vm118, %v113, %v115
    %v120 = vsel %vm118, %v115, %v117
    %v123 = vsel %vm87, 0.0, %v119
    %v124 = vsel %vm88, 0.0, %v120
    %125 = vrot.lane.b32.xlu0 %v83, 110
    %v126 = vpop.permute.xlu0 %125
    %127 = vrot.lane.b32.xlu0 %v84, 110
    %v128 = vpop.permute.xlu0 %127
    %129 = vrot.lane.b32.xlu0 %v91, 110
    %v130 = vpop.permute.xlu0 %129
    %vm131 = vcmask 900096
    %v132 = vsel %vm131, %v126, %v128
    %v133 = vsel %vm131, %v128, %v130
    %v136 = vsel %vm94, 0.0, %v132
    %v137 = vsel %vm95, 0.0, %v133
    %138 = vrot.lane.b32.xlu0 %v83, 96
    %v139 = vpop.permute.xlu0 %138
    %140 = vrot.lane.b32.xlu0 %v84, 96
    %v141 = vpop.permute.xlu0 %140
    %142 = vrot.lane.b32.xlu0 %v91, 96
    %v143 = vpop.permute.xlu0 %142
    %vm144 = vcmask 785408
    %v145 = vsel %vm144, %v139, %v141
    %v146 = vsel %vm144, %v141, %v143
    %v149 = vsel %vm87, 0.0, %v145
    %v150 = vsel %vm88, 0.0, %v146
    %151 = vrot.lane.b32.xlu0 %v83, 94
    %v152 = vpop.permute.xlu0 %151
    %153 = vrot.lane.b32.xlu0 %v84, 94
    %v154 = vpop.permute.xlu0 %153
    %155 = vrot.lane.b32.xlu0 %v91, 94
    %v156 = vpop.permute.xlu0 %155
    %vm157 = vcmask 769024
    %v158 = vsel %vm157, %v152, %v154
    %v159 = vsel %vm157, %v154, %v156
    %v162 = vsel %vm94, 0.0, %v158
    %v163 = vsel %vm95, 0.0, %v159
    %164 = vrot.lane.b32.xlu0 %v83, 127
    %v165 = vpop.permute.xlu0 %164
    %166 = vrot.lane.b32.xlu0 %v84, 127
    %v167 = vpop.permute.xlu0 %166
    %168 = vrot.lane.b32.xlu0 %v91, 127
    %v169 = vpop.permute.xlu0 %168
    %vm170 = vcmask 1039360
    %v171 = vsel %vm170, %v165, %v167
    %v172 = vsel %vm170, %v167, %v169
    %175 = vrot.lane.b32.xlu0 %v83, 111
    %v176 = vpop.permute.xlu0 %175
    %177 = vrot.lane.b32.xlu0 %v84, 111
    %v178 = vpop.permute.xlu0 %177
    %179 = vrot.lane.b32.xlu0 %v91, 111
    %v180 = vpop.permute.xlu0 %179
    %vm181 = vcmask 908288
    %v182 = vsel %vm181, %v176, %v178
    %v183 = vsel %vm181, %v178, %v180
    %186 = vrot.lane.b32.xlu0 %v83, 95
    %v187 = vpop.permute.xlu0 %186
    %188 = vrot.lane.b32.xlu0 %v84, 95
    %v189 = vpop.permute.xlu0 %188
    %190 = vrot.lane.b32.xlu0 %v91, 95
    %v191 = vpop.permute.xlu0 %190
    %vm192 = vcmask 777216
    %v193 = vsel %vm192, %v187, %v189
    %v194 = vsel %vm192, %v189, %v191
    %v197 = vld [vmem:[#allocation3] sm:$0xff]
    %v198 = vld [vmem:[#allocation3 + $0x8] sm:$0xff]
    %v199 = vld [vmem:[%s2] sm:$0xff]
    %v200 = vld [vmem:[%s2 + $0x8] sm:$0xff]
    %202 = vset.pattern.permute.xlu0 0
    %203 = vperm.xlu0 %202, %v199
    %v204 = vpop.permute.xlu0 %203
    %207 = vset.pattern.permute.xlu0 0
    %208 = vperm.xlu0 %207, %v200
    %v209 = vpop.permute.xlu0 %208
    %vm211 = vcmask 588800
    %v213 = vsel %vm211, %v197, 0
    %v216 = vsel %vm211, %v198, 0
    %218 = vmatpush.msra.mxu0 0.0
    %219 = vmatpush.msra.mxu0 0.0
    %220 = vmatpush.msra.mxu0 0.0
    %221 = vmatpush.msra.mxu0 0.0
    %222 = vmatpush.msra.mxu0 0.0
    %223 = vmatpush.msra.mxu0 0.0
    %224 = vmatpush.msra.mxu0 0.0
    %225 = vmatpush.msra.mxu0 %v162
    %226 = vmatpush.msra.mxu0 %v193
    %227 = vmatpush.msra.mxu0 %v149
    %228 = vmatpush.msra.mxu0 %v136
    %229 = vmatpush.msra.mxu0 %v182
    %230 = vmatpush.msra.mxu0 %v123
    %231 = vmatpush.msra.mxu0 %v110
    %232 = vmatpush.msra.mxu0 %v171
    %233 = vmatpush.msra.mxu0 %v89
    %234 = vmatmul.f32.gmra.mxu0 %v213
    %v235 = vpop.f32.mrf.mxu0
    %v236 = vadd.f32 %v204, %v235
    %237 = vmatmul.f32.gmra.mxu0 %v216
    %v238 = vpop.f32.mrf.mxu0
    %v239 = vadd.f32 %v209, %v238
    %240 = vdwg.mxu0
    %241 = vmatpush.msra.mxu0 0.0
    %242 = vmatpush.msra.mxu0 0.0
    %243 = vmatpush.msra.mxu0 0.0
    %244 = vmatpush.msra.mxu0 0.0
    %245 = vmatpush.msra.mxu0 0.0
    %246 = vmatpush.msra.mxu0 0.0
    %247 = vmatpush.msra.mxu0 0.0
    %248 = vmatpush.msra.mxu0 %v163
    %249 = vmatpush.msra.mxu0 %v194
    %250 = vmatpush.msra.mxu0 %v150
    %251 = vmatpush.msra.mxu0 %v137
    %252 = vmatpush.msra.mxu0 %v183
    %253 = vmatpush.msra.mxu0 %v124
    %254 = vmatpush.msra.mxu0 %v111
    %255 = vmatpush.msra.mxu0 %v172
    %256 = vmatpush.msra.mxu0 %v90
    %257 = vmatmul.f32.gmra.mxu0 %v213
    %v258 = vpop.f32.mrf.mxu0
    %v259 = vadd.f32 %v204, %v258
    %260 = vmatmul.f32.gmra.mxu0 %v216
    %v261 = vpop.f32.mrf.mxu0
    %v262 = vadd.f32 %v209, %v261
    %263 = vdwg.mxu0
    %v264 = vmax.f32 %v236, 0.0
    %v265 = vmax.f32 %v259, 0.0
    %v266 = vmax.f32 %v239, 0.0
    %v267 = vmax.f32 %v262, 0.0
    %268 = vst [vmem:[#allocation6] sm:$0xff] %v264
    %269 = vst [vmem:[#allocation6 + $0x8] sm:$0xff] %v265
    %270 = vst [vmem:[#allocation6 + $0x10] sm:$0xff] %v266
    %271 = vst [vmem:[#allocation6 + $0x18] sm:$0xff] %v267
    // Predicated region
    $region18: #{tpu_custom_call.1} parent=1 // pred_check
      _
    $region19: #{tpu_custom_call.1} parent=1 // pred_check_branch
      %273 = sbr.rel (0) target = $region21
    $region20: #{tpu_custom_call.1} parent=1 // pred_region
      %275 = vsyncadd [#allocation5], 0
      %s276 = sshll.u32 [#allocation6], 4
      %s277 = int_to_ptr.vmem [resolvable:$true] %s276
      %s278 = sshll.u32 %s3, 4
      %s279 = int_to_ptr.hbm [resolvable:$true] %s278
      %284 = dma.vmem_to_hbm [thread:$0]  %s277, 512, %s279, [#allocation5], 256, 256, 16
    $region21: #{tpu_custom_call.1} parent=1 // pred_fallthru
      _
    // Predicated region
    $region22: #{tpu_custom_call.1} parent=1 // pred_check
      _
    $region23: #{tpu_custom_call.1} parent=1 // pred_check_branch
      %286 = sbr.rel (0) target = $region25
    $region24: #{tpu_custom_call.1} parent=1 // pred_region
      %288 = dma.done [#allocation5], 512
    $region25: #{tpu_custom_call.1} parent=1 // pred_fallthru
      _
    %289 = vsyncpa [#allocation4], 1
    %290 = vsyncpa [#allocation5], 1

</llo_original>
